<compile_context>
chip_gen: v6e
topology: v6e:2x2x1
jax: 0.10.0
libtpu: 0.0.40
codegen_flags: <defaults>
</compile_context>

<pallas_src>
import functools

import jax
import jax.numpy as jnp
from jax.experimental import pallas as pl
from jax.experimental.pallas import tpu as pltpu


# ---------------------------------------------------------------------------
# Logical / padded sizes
# ---------------------------------------------------------------------------
C_IN = 3                  # RGB input
C_STEM = 32               # stem conv output channels (logical)
N_CLASSES = 11            # logical number of classes
K_LOGICAL = 9 * C_IN      # 27 = 3x3 patch * Cin  (im2col contraction dim)
K_PAD = 32                # contraction dim padded to a clean multiple of 8
C_PAD = 128               # stem channels padded to full lane width
N_PAD = 128               # classes padded to full lane width


# ---------------------------------------------------------------------------
# Fused kernel: (im2col @ Wconv + b) -> ReLU -> GAP accumulate -> FC head
# grid = (B, HW_tiles); batch axis "parallel", spatial/pool axis "arbitrary".
# ---------------------------------------------------------------------------
def _stem_pool_fc_kernel(cols_ref, wc_ref, bc_ref, wf_ref, bf_ref,
                         o_ref, psum_ref, *, inv_hw):
    m = pl.program_id(1)

    @pl.when(m == 0)
    def _():
        psum_ref[...] = jnp.zeros_like(psum_ref)

    # (TM, Kpad) bf16 @ (Kpad, Cpad) bf16 -> f32 accumulation on the MXU.
    acc = jnp.dot(cols_ref[0], wc_ref[...],
                  preferred_element_type=jnp.float32)
    acc = jnp.maximum(acc + bc_ref[...], 0.0)          # bias + ReLU in f32

    # Global-average-pool partial sum over this spatial tile.
    psum_ref[...] += jnp.sum(acc, axis=0, keepdims=True)

    @pl.when(m == pl.num_programs(1) - 1)
    def _():
        pooled = psum_ref[...] * inv_hw                # (1, Cpad) f32
        logits = jnp.dot(pooled, wf_ref[...],
                         preferred_element_type=jnp.float32) + bf_ref[...]
        o_ref[...] = logits.reshape(o_ref.shape).astype(o_ref.dtype)


def _pick_block_rows(hw, target=512):
    """Largest multiple-of-8 divisor of hw that is <= target (else hw)."""
    if hw <= target:
        return hw
    for t in range(target, 7, -1):
        if hw % t == 0 and t % 8 == 0:
            return t
    return hw


def stem_pool_fc(cols, w_conv, b_conv, w_fc, b_fc, *, hw):
    """cols: (B, HW, K_PAD) bf16 -> logits (B, N_PAD) f32."""
    B, HW, K = cols.shape
    Kw, Cpad = w_conv.shape
    _, Npad = w_fc.shape
    assert K == Kw and HW == hw

    tm = _pick_block_rows(HW)
    n_m = HW // tm

    kernel = functools.partial(_stem_pool_fc_kernel, inv_hw=1.0 / float(hw))

    out = pl.pallas_call(
        kernel,
        out_shape=jax.ShapeDtypeStruct((B, 1, Npad), jnp.float32),
        grid_spec=pltpu.PrefetchScalarGridSpec(
            num_scalar_prefetch=0,
            grid=(B, n_m),
            in_specs=[
                # streamed per-tile activations (bf16, double-buffered)
                pl.BlockSpec((1, tm, K), lambda b, m: (b, m, 0)),
                # resident weights / biases
                pl.BlockSpec((Kw, Cpad), lambda b, m: (0, 0)),
                pl.BlockSpec((1, Cpad), lambda b, m: (0, 0)),
                pl.BlockSpec((Cpad, Npad), lambda b, m: (0, 0)),
                pl.BlockSpec((1, Npad), lambda b, m: (0, 0)),
            ],
            # same output block across the m (reduction) axis -> accumulator
            out_specs=pl.BlockSpec((1, 1, Npad), lambda b, m: (b, 0, 0)),
            scratch_shapes=[pltpu.VMEM((1, Cpad), jnp.float32)],
        ),
        compiler_params=pltpu.CompilerParams(
            dimension_semantics=("parallel", "arbitrary"),
            vmem_limit_bytes=32 * 1024 * 1024,
        ),
    )(cols, w_conv, b_conv, w_fc, b_fc)
    return out[:, 0, :]


# ---------------------------------------------------------------------------
# Glue: im2col for 3x3 / stride 1 / pad 1 conv (plain JAX data rearrangement)
# ---------------------------------------------------------------------------
def im2col_3x3(x_nhwc):
    # TODO(synk): the 3x3 taps are not yet fused into the kernel (halo-tile /
    # shifted-dot form); im2col still pays ~9x input-read amplification.
    B, H, W, C = x_nhwc.shape
    xp = jnp.pad(x_nhwc, ((0, 0), (1, 1), (1, 1), (0, 0)))
    patches = [xp[:, di:di + H, dj:dj + W, :]
               for di in range(3) for dj in range(3)]          # (kh, kw, cin)
    p = jnp.concatenate(patches, axis=-1).reshape(B, H * W, 9 * C)
    p = jnp.pad(p, ((0, 0), (0, 0), (0, K_PAD - 9 * C)))
    return p.astype(jnp.bfloat16)                              # bf16 MXU feed


# ---------------------------------------------------------------------------
# Parameters (built in-script) + forward
# ---------------------------------------------------------------------------
def init_params(key):
    k1, k2, k3, k4 = jax.random.split(key, 4)
    # conv weight in PyTorch layout (Cout, Cin, kH, kW)
    w_conv = jax.random.normal(k1, (C_STEM, C_IN, 3, 3), jnp.float32) * 0.1
    b_conv = jax.random.normal(k2, (C_STEM,), jnp.float32) * 0.01
    w_fc = jax.random.normal(k3, (C_STEM, N_CLASSES), jnp.float32) * 0.1
    b_fc = jax.random.normal(k4, (N_CLASSES,), jnp.float32) * 0.01

    # (Cout, Cin, kH, kW) -> (kH, kW, Cin, Cout) -> (9*Cin, Cout): matches the
    # im2col (kh, kw, cin) patch order. Zero-pad to lane-dense shapes.
    w_conv_mat = jnp.transpose(w_conv, (2, 3, 1, 0)).reshape(K_LOGICAL, C_STEM)
    w_conv_pad = jnp.zeros((K_PAD, C_PAD), jnp.float32)
    w_conv_pad = w_conv_pad.at[:K_LOGICAL, :C_STEM].set(w_conv_mat)
    b_conv_pad = jnp.zeros((1, C_PAD), jnp.float32).at[0, :C_STEM].set(b_conv)
    w_fc_pad = jnp.zeros((C_PAD, N_PAD), jnp.float32)
    w_fc_pad = w_fc_pad.at[:C_STEM, :N_CLASSES].set(w_fc)
    b_fc_pad = jnp.zeros((1, N_PAD), jnp.float32).at[0, :N_CLASSES].set(b_fc)

    params = dict(
        w_conv=w_conv_pad.astype(jnp.bfloat16),   # bf16 MXU operand
        b_conv=b_conv_pad,                        # elementwise path stays f32
        w_fc=w_fc_pad,
        b_fc=b_fc_pad,
    )
    ref_params = dict(w_conv=w_conv, b_conv=b_conv, w_fc=w_fc, b_fc=b_fc)
    return params, ref_params


@jax.jit
def net_forward(x_nchw, params):
    B, C, H, W = x_nchw.shape
    x_nhwc = jnp.transpose(x_nchw, (0, 2, 3, 1))              # NCHW -> NHWC
    cols = im2col_3x3(x_nhwc)                                  # (B, HW, K_PAD)
    logits = stem_pool_fc(cols, params["w_conv"], params["b_conv"],
                          params["w_fc"], params["b_fc"], hw=H * W)
    logits = logits[:, :N_CLASSES]                             # drop lane pad
    # PyTorch .squeeze(-1) is a no-op when last dim != 1
    if logits.shape[-1] == 1:
        logits = jnp.squeeze(logits, axis=-1)
    return logits


# Pure-JAX reference (f32) for a correctness check.
def net_reference(x_nchw, rp):
    x_nhwc = jnp.transpose(x_nchw, (0, 2, 3, 1))
    w_hwio = jnp.transpose(rp["w_conv"], (2, 3, 1, 0))
    y = jax.lax.conv_general_dilated(
        x_nhwc, w_hwio, window_strides=(1, 1), padding="SAME",
        dimension_numbers=("NHWC", "HWIO", "NHWC"))
    y = jnp.maximum(y + rp["b_conv"], 0.0)
    pooled = jnp.mean(y, axis=(1, 2))
    return pooled @ rp["w_fc"] + rp["b_fc"]


if __name__ == "__main__":
    key = jax.random.PRNGKey(0)
    kx, kp = jax.random.split(key)
    # small classifier-like shapes: batch=2, RGB, 32x32 (gives 2 spatial tiles)
    x = jax.random.normal(kx, (2, C_IN, 32, 32), jnp.float32)
    params, ref_params = init_params(kp)

    out = net_forward(x, params)
    jax.block_until_ready(out)
    assert out.shape == (2, N_CLASSES), out.shape

    ref = net_reference(x, ref_params)
    err = float(jnp.max(jnp.abs(out - ref)))
    assert err < 5e-2, f"max abs error vs reference: {err}"
    print("KERNEL_OK")
</pallas_src>

<mosaic_0001>
module attributes {stable_mosaic.version = 11 : i64} {
  func.func @_stem_pool_fc_kernel(%arg0: i32, %arg1: i32, %arg2: memref<1x512x32xbf16, #tpu.memory_space<vmem>>, %arg3: memref<32x128xbf16, #tpu.memory_space<vmem>>, %arg4: memref<1x128xf32, #tpu.memory_space<vmem>>, %arg5: memref<128x128xf32, #tpu.memory_space<vmem>>, %arg6: memref<1x128xf32, #tpu.memory_space<vmem>>, %arg7: memref<1x1x128xf32, #tpu.memory_space<vmem>>, %arg8: memref<1x128xf32, #tpu.memory_space<vmem>>) attributes {dimension_semantics = [#tpu.dimension_semantics<parallel>, #tpu.dimension_semantics<arbitrary>], iteration_bounds = array<i64: 2, 2>, scalar_prefetch = 0 : i64, scratch_operands = 1 : i64, tpu.core_type = #tpu.core_type<tc>, window_params = [{transform_indices = @transform_0, window_bounds = array<i64: 1, 512, 32>}, {pipeline_mode = #tpu.pipeline_mode<synchronous>, transform_indices = @transform_1, window_bounds = array<i64: 32, 128>}, {pipeline_mode = #tpu.pipeline_mode<synchronous>, transform_indices = @transform_2, window_bounds = array<i64: 1, 128>}, {pipeline_mode = #tpu.pipeline_mode<synchronous>, transform_indices = @transform_3, window_bounds = array<i64: 128, 128>}, {pipeline_mode = #tpu.pipeline_mode<synchronous>, transform_indices = @transform_4, window_bounds = array<i64: 1, 128>}, {transform_indices = @transform_5, window_bounds = array<i64: 1, 1, 128>}]} {
    %c0_i32 = arith.constant 0 : i32
    %0 = arith.cmpi eq, %arg1, %c0_i32 : i32
    %1 = arith.extui %0 : i1 to i32
    %c0_i32_0 = arith.constant 0 : i32
    %2 = arith.cmpi ne, %1, %c0_i32_0 : i32
    scf.if %2 {
      %cst_14 = arith.constant 0.000000e+00 : f32
      %20 = vector.broadcast %cst_14 : f32 to vector<1x128xf32>
      %c0_15 = arith.constant 0 : index
      %c0_16 = arith.constant 0 : index
      %21 = vector.load %arg8[%c0_15, %c0_16] : memref<1x128xf32, #tpu.memory_space<vmem>>, vector<1x128xf32>
      tpu.vector_store %arg8[%c0_15, %c0_16], %20 {strides = array<i32>} : memref<1x128xf32, #tpu.memory_space<vmem>>, vector<1x128xf32>,
    } else {
    }
    %c0 = arith.constant 0 : index
    %c0_1 = arith.constant 0 : index
    %c0_2 = arith.constant 0 : index
    %3 = vector.load %arg2[%c0, %c0_1, %c0_2] : memref<1x512x32xbf16, #tpu.memory_space<vmem>>, vector<1x512x32xbf16>
    %4 = vector.shape_cast %3 : vector<1x512x32xbf16> to vector<512x32xbf16>
    %c0_3 = arith.constant 0 : index
    %c0_4 = arith.constant 0 : index
    %5 = vector.load %arg3[%c0_3, %c0_4] : memref<32x128xbf16, #tpu.memory_space<vmem>>, vector<32x128xbf16>
    %cst = arith.constant dense<0.000000e+00> : vector<512x128xf32>
    %6 = tpu.matmul %4, %5, %cst {dimension_numbers = #tpu.dot_dimension_numbers<[1], [0], [0], [1], [0, 0, 1, 1], [], []>} : vector<512x32xbf16>, vector<32x128xbf16>, vector<512x128xf32> -> vector<512x128xf32>
    %c0_5 = arith.constant 0 : index
    %c0_6 = arith.constant 0 : index
    %7 = vector.load %arg4[%c0_5, %c0_6] : memref<1x128xf32, #tpu.memory_space<vmem>>, vector<1x128xf32>
    %8 = vector.broadcast %7 : vector<1x128xf32> to vector<512x128xf32>
    %9 = arith.addf %6, %8 : vector<512x128xf32>
    %cst_7 = arith.constant 0.000000e+00 : f32
    %10 = vector.broadcast %cst_7 : f32 to vector<512x128xf32>
    %11 = arith.maximumf %9, %10 : vector<512x128xf32>
    %c0_8 = arith.constant 0 : index
    %c0_9 = arith.constant 0 : index
    %12 = vector.load %arg8[%c0_8, %c0_9] : memref<1x128xf32, #tpu.memory_space<vmem>>, vector<1x128xf32>
    %cst_10 = arith.constant dense<0.000000e+00> : vector<128xf32>
    %13 = vector.multi_reduction <add>, %11, %cst_10 [0] : vector<512x128xf32> to vector<128xf32>
    %14 = vector.shape_cast %13 : vector<128xf32> to vector<1x128xf32>
    %15 = arith.addf %12, %14 : vector<1x128xf32>
    %c0_11 = arith.constant 0 : index
    %c0_12 = arith.constant 0 : index
    %16 = vector.load %arg8[%c0_11, %c0_12] : memref<1x128xf32, #tpu.memory_space<vmem>>, vector<1x128xf32>
    tpu.vector_store %arg8[%c0_11, %c0_12], %15 {strides = array<i32>} : memref<1x128xf32, #tpu.memory_space<vmem>>, vector<1x128xf32>,
    %c1_i32 = arith.constant 1 : i32
    %17 = arith.cmpi eq, %arg1, %c1_i32 : i32
    %18 = arith.extui %17 : i1 to i32
    %c0_i32_13 = arith.constant 0 : i32
    %19 = arith.cmpi ne, %18, %c0_i32_13 : i32
    scf.if %19 {
      %c0_14 = arith.constant 0 : index
      %c0_15 = arith.constant 0 : index
      %20 = vector.load %arg8[%c0_14, %c0_15] : memref<1x128xf32, #tpu.memory_space<vmem>>, vector<1x128xf32>
      %cst_16 = arith.constant 9.765625E-4 : f32
      %21 = vector.broadcast %cst_16 : f32 to vector<1x128xf32>
      %22 = arith.mulf %20, %21 : vector<1x128xf32>
      %c0_17 = arith.constant 0 : index
      %c0_18 = arith.constant 0 : index
      %23 = vector.load %arg5[%c0_17, %c0_18] : memref<128x128xf32, #tpu.memory_space<vmem>>, vector<128x128xf32>
      %cst_19 = arith.constant dense<0.000000e+00> : vector<1x128xf32>
      %24 = tpu.matmul %22, %23, %cst_19 {dimension_numbers = #tpu.dot_dimension_numbers<[1], [0], [0], [1], [0, 0, 1, 1], [], []>} : vector<1x128xf32>, vector<128x128xf32>, vector<1x128xf32> -> vector<1x128xf32>
      %c0_20 = arith.constant 0 : index
      %c0_21 = arith.constant 0 : index
      %25 = vector.load %arg6[%c0_20, %c0_21] : memref<1x128xf32, #tpu.memory_space<vmem>>, vector<1x128xf32>
      %26 = arith.addf %24, %25 : vector<1x128xf32>
      %27 = vector.shape_cast %26 : vector<1x128xf32> to vector<1x1x128xf32>
      %c0_22 = arith.constant 0 : index
      %c0_23 = arith.constant 0 : index
      %c0_24 = arith.constant 0 : index
      %28 = vector.load %arg7[%c0_22, %c0_23, %c0_24] : memref<1x1x128xf32, #tpu.memory_space<vmem>>, vector<1x1x128xf32>
      tpu.vector_store %arg7[%c0_22, %c0_23, %c0_24], %27 {strides = array<i32>} : memref<1x1x128xf32, #tpu.memory_space<vmem>>, vector<1x1x128xf32>,
    } else {
    }
    return
  }
  func.func @transform_0(%arg0: i32, %arg1: i32) -> (i32, i32, i32) {
    %c0_i32 = arith.constant 0 : i32
    %c0_i32_0 = arith.constant 0 : i32
    return %arg0, %arg1, %c0_i32 : i32, i32, i32
  }
  func.func @transform_1(%arg0: i32, %arg1: i32) -> (i32, i32) {
    %c0_i32 = arith.constant 0 : i32
    %c0_i32_0 = arith.constant 0 : i32
    %c0_i32_1 = arith.constant 0 : i32
    return %c0_i32, %c0_i32_0 : i32, i32
  }
  func.func @transform_2(%arg0: i32, %arg1: i32) -> (i32, i32) {
    %c0_i32 = arith.constant 0 : i32
    %c0_i32_0 = arith.constant 0 : i32
    %c0_i32_1 = arith.constant 0 : i32
    return %c0_i32, %c0_i32_0 : i32, i32
  }
  func.func @transform_3(%arg0: i32, %arg1: i32) -> (i32, i32) {
    %c0_i32 = arith.constant 0 : i32
    %c0_i32_0 = arith.constant 0 : i32
    %c0_i32_1 = arith.constant 0 : i32
    return %c0_i32, %c0_i32_0 : i32, i32
  }
  func.func @transform_4(%arg0: i32, %arg1: i32) -> (i32, i32) {
    %c0_i32 = arith.constant 0 : i32
    %c0_i32_0 = arith.constant 0 : i32
    %c0_i32_1 = arith.constant 0 : i32
    return %c0_i32, %c0_i32_0 : i32, i32
  }
  func.func @transform_5(%arg0: i32, %arg1: i32) -> (i32, i32, i32) {
    %c0_i32 = arith.constant 0 : i32
    %c0_i32_0 = arith.constant 0 : i32
    %c0_i32_1 = arith.constant 0 : i32
    return %arg0, %c0_i32, %c0_i32_0 : i32, i32, i32
  }
}

</mosaic_0001>

<llo_original>
// kernel: net_forward.1
$region0: #{net_forward.1}
  #allocation0 [shape = 'u32[]', space=smem, size = 0x4, offset = 0x4, fixed_abs, tag = 'smem constant byte address 0x4 - core index']
  #allocation1 [shape = 'u32[144,128]{1,0:T(1,128)}', space=vmem, size = 0x12000, scoped, tag = 'internal scratch']
  #allocation2 [shape = 'f32[1,128]{1,0:T(1,128)}', space=vmem, size = 0x200, scoped, tag = 'scratch operand']
  %s0 = inlined_call_operand.vmem [shape: bf16[2,1024,32], index: 0, kind: input, shape index: {}]
  %s1 = inlined_call_operand.vmem [shape: bf16[32,128], index: 1, kind: input, shape index: {}]
  %s2 = inlined_call_operand.vmem [shape: f32[1,128], index: 2, kind: input, shape index: {}]
  %s3 = inlined_call_operand.vmem [shape: f32[128,128], index: 3, kind: input, shape index: {}]
  %s4 = inlined_call_operand.vmem [shape: f32[1,128], index: 4, kind: input, shape index: {}]
  %s5 = inlined_call_operand.hbm [shape: f32[2,1,128], index: 5, kind: output, shape index: {}]
  %s6 = sld [smem:[#allocation0]]
  $region61: #{net_forward.1} parent=0
    _
  %s8 = ssub.s32 1, %s6
  %s9 = scalar_select 0, %s8, %s6
  $region1: #{net_forward.1} parent=0
    #allocation3 [shape = 'u8[1024]{0}', space=vmem, size = 0x400, scoped, tag = 'output window, operand 0']
    #allocation4 [shape = 's32[2]{0}', space=sflag, size = 0x8, scoped, tag = 'scoped memory for net_forward.1']
    %10 = vsyncpa [#allocation4], 0
    %s11 = scalar_lea.sflag [#allocation4], 1
    %12 = vsyncpa %s11, 0
    loop: start=0, step=1, limit=6
    $region2: #{net_forward.1} parent=1 // loop_pre_header
      _
    $region3: #{net_forward.1} parent=1 // loop_header
      %s14 = sphi 0, %s18
      %p15 = scmp.ge.s32.totalorder %s14, 6
      %s21 = sphi 0, %s33
      %s22 = sphi 0, %s29
      %s23 = sphi 0, %s21
      %s24 = sphi 0, %s22
      %s25 = sphi 0, %s23
      %s26 = sphi 0, %s24
      %s38 = sphi 0, %s40
      %s41 = sphi 0, %s38
      %s42 = sphi 0, %s41
      %s58 = sphi 0, %s42
      %s62 = sphi 0, %s62
      %s64 = sphi 0, %s62
      %s65 = sphi 0, %s64
      %s79 = sphi 0, %s65
      %s83 = sphi 0, %s83
      %s85 = sphi 0, %s83
      %s86 = sphi 0, %s85
      %s100 = sphi 0, %s86
      %s104 = sphi 0, %s104
      %s106 = sphi 0, %s104
      %s107 = sphi 0, %s106
      %s121 = sphi 0, %s107
      %s125 = sphi 0, %s125
      %s127 = sphi 0, %s125
      %s128 = sphi 0, %s127
      %s142 = sphi 0, %s128
      %s148 = sphi 0, %s150
      %s151 = sphi 0, %s148
      %s152 = sphi 0, %s151
      %s168 = sphi 0, %s152
    $region4: #{net_forward.1} parent=1 // loop_header_branch
      %17 = sbr.rel (%p15) target = $region8
    $region5: #{net_forward.1} parent=1 // loop_body
      %s19 = ssub.s32 %s14, 1
      %s20 = ssub.s32 %s14, 2
      %s27 = sadd.s32 1, %s22
      %p28 = scmp.ge.s32.totalorder %s27, 2
      %s29 = scalar_select %p28, 0, %s27
      %s30 = sadd.s32 1, %s21
      %s31 = scalar_select %p28, %s30, %s21
      %p32 = scmp.ge.s32.totalorder %s31, 2
      %s33 = scalar_select %p32, 0, %s31
      %s34 = ssub.s32 %s21, %s33
      %s35 = ssub.s32 %s22, %s29
      %s36 = sor.u32 %s34, %s35
      %p37 = scmp.eq.s32.totalorder %s36, 0
      %s39 = sadd.s32 %s38, 1
      %s40 = scalar_select %p37, %s38, %s39
      %p43 = pneg %p37
      %p44 = scmp.eq.s32.totalorder %s14, 3
      %p45 = por %p43, %p44
      %p46 = scmp.ne.s32.totalorder %s38, %s41
      %p47 = scmp.eq.s32.totalorder %s14, 0
      %p48 = por %p46, %p47
      %p49 = scmp.ne.s32.totalorder %s38, %s41
      %p50 = scmp.eq.s32.totalorder %s19, 3
      %p51 = por %p49, %p50
      %p52 = scmp.ne.s32.totalorder %s41, %s42
      %p53 = scmp.eq.s32.totalorder %s19, 0
      %p54 = por %p52, %p53
      %p55 = scmp.ne.s32.totalorder %s41, %s42
      %p56 = scmp.eq.s32.totalorder %s20, 3
      %p57 = por %p55, %p56
      %p59 = scmp.ne.s32.totalorder %s42, %s58
      %p60 = scmp.eq.s32.totalorder %s20, 0
      %p61 = por %p59, %p60
      %s63 = sadd.s32 %s62, 1
      %p66 = scmp.eq.s32.totalorder %s14, 3
      %p67 = scmp.ne.s32.totalorder %s62, %s64
      %p68 = scmp.eq.s32.totalorder %s14, 0
      %p69 = por %p67, %p68
      %p70 = scmp.ne.s32.totalorder %s62, %s64
      %p71 = scmp.eq.s32.totalorder %s19, 3
      %p72 = por %p70, %p71
      %p73 = scmp.ne.s32.totalorder %s64, %s65
      %p74 = scmp.eq.s32.totalorder %s19, 0
      %p75 = por %p73, %p74
      %p76 = scmp.ne.s32.totalorder %s64, %s65
      %p77 = scmp.eq.s32.totalorder %s20, 3
      %p78 = por %p76, %p77
      %p80 = scmp.ne.s32.totalorder %s65, %s79
      %p81 = scmp.eq.s32.totalorder %s20, 0
      %p82 = por %p80, %p81
      %s84 = sadd.s32 %s83, 1
      %p87 = scmp.eq.s32.totalorder %s14, 3
      %p88 = scmp.ne.s32.totalorder %s83, %s85
      %p89 = scmp.eq.s32.totalorder %s14, 0
      %p90 = por %p88, %p89
      %p91 = scmp.ne.s32.totalorder %s83, %s85
      %p92 = scmp.eq.s32.totalorder %s19, 3
      %p93 = por %p91, %p92
      %p94 = scmp.ne.s32.totalorder %s85, %s86
      %p95 = scmp.eq.s32.totalorder %s19, 0
      %p96 = por %p94, %p95
      %p97 = scmp.ne.s32.totalorder %s85, %s86
      %p98 = scmp.eq.s32.totalorder %s20, 3
      %p99 = por %p97, %p98
      %p101 = scmp.ne.s32.totalorder %s86, %s100
      %p102 = scmp.eq.s32.totalorder %s20, 0
      %p103 = por %p101, %p102
      %s105 = sadd.s32 %s104, 1
      %p108 = scmp.eq.s32.totalorder %s14, 3
      %p109 = scmp.ne.s32.totalorder %s104, %s106
      %p110 = scmp.eq.s32.totalorder %s14, 0
      %p111 = por %p109, %p110
      %p112 = scmp.ne.s32.totalorder %s104, %s106
      %p113 = scmp.eq.s32.totalorder %s19, 3
      %p114 = por %p112, %p113
      %p115 = scmp.ne.s32.totalorder %s106, %s107
      %p116 = scmp.eq.s32.totalorder %s19, 0
      %p117 = por %p115, %p116
      %p118 = scmp.ne.s32.totalorder %s106, %s107
      %p119 = scmp.eq.s32.totalorder %s20, 3
      %p120 = por %p118, %p119
      %p122 = scmp.ne.s32.totalorder %s107, %s121
      %p123 = scmp.eq.s32.totalorder %s20, 0
      %p124 = por %p122, %p123
      %s126 = sadd.s32 %s125, 1
      %p129 = scmp.eq.s32.totalorder %s14, 3
      %p130 = scmp.ne.s32.totalorder %s125, %s127
      %p131 = scmp.eq.s32.totalorder %s14, 0
      %p132 = por %p130, %p131
      %p133 = scmp.ne.s32.totalorder %s125, %s127
      %p134 = scmp.eq.s32.totalorder %s19, 3
      %p135 = por %p133, %p134
      %p136 = scmp.ne.s32.totalorder %s127, %s128
      %p137 = scmp.eq.s32.totalorder %s19, 0
      %p138 = por %p136, %p137
      %p139 = scmp.ne.s32.totalorder %s127, %s128
      %p140 = scmp.eq.s32.totalorder %s20, 3
      %p141 = por %p139, %p140
      %p143 = scmp.ne.s32.totalorder %s128, %s142
      %p144 = scmp.eq.s32.totalorder %s20, 0
      %p145 = por %p143, %p144
      %s146 = ssub.s32 %s21, %s33
      %p147 = scmp.eq.s32.totalorder %s146, 0
      %s149 = sadd.s32 %s148, 1
      %s150 = scalar_select %p147, %s148, %s149
      %p153 = pneg %p147
      %p154 = scmp.eq.s32.totalorder %s14, 3
      %p155 = por %p153, %p154
      %p156 = scmp.ne.s32.totalorder %s148, %s151
      %p157 = scmp.eq.s32.totalorder %s14, 0
      %p158 = por %p156, %p157
      %p159 = scmp.ne.s32.totalorder %s148, %s151
      %p160 = scmp.eq.s32.totalorder %s19, 3
      %p161 = por %p159, %p160
      %p162 = scmp.ne.s32.totalorder %s151, %s152
      %p163 = scmp.eq.s32.totalorder %s19, 0
      %p164 = por %p162, %p163
      %p165 = scmp.ne.s32.totalorder %s151, %s152
      %p166 = scmp.eq.s32.totalorder %s20, 3
      %p167 = por %p165, %p166
      %p169 = scmp.ne.s32.totalorder %s152, %s168
      %p170 = scmp.eq.s32.totalorder %s20, 0
      %p171 = por %p169, %p170
      %p172 = scmp.le.s32.totalorder 1, %s14
      %p173 = scmp.lt.s32.totalorder %s14, 5
      %p174 = pnand %p172, %p173
      %p175 = pneg %p174
      // Predicated region
      $region9: #{net_forward.1} parent=5 // pred_check
        _
      $region10: #{net_forward.1} parent=5 // pred_check_branch
        %177 = sbr.rel (%p174) target = $region12
      $region11: #{net_forward.1} parent=5 // pred_region
        %s178 = ssub.s32 %s14, 1
        // Predicated region
        $region13: #{net_forward.1} parent=11 // pred_check
          %p179 = pneg %p75
        $region14: #{net_forward.1} parent=11 // pred_check_branch
          %181 = sbr.rel (%p179) target = $region16
        $region15: #{net_forward.1} parent=11 // pred_region
          _
        $region16: #{net_forward.1} parent=11 // pred_fallthru
          _
        // Predicated region
        $region17: #{net_forward.1} parent=11 // pred_check
          %p182 = pneg %p96
        $region18: #{net_forward.1} parent=11 // pred_check_branch
          %184 = sbr.rel (%p182) target = $region20
        $region19: #{net_forward.1} parent=11 // pred_region
          _
        $region20: #{net_forward.1} parent=11 // pred_fallthru
          _
        // Predicated region
        $region21: #{net_forward.1} parent=11 // pred_check
          %p185 = pneg %p117
        $region22: #{net_forward.1} parent=11 // pred_check_branch
          %187 = sbr.rel (%p185) target = $region24
        $region23: #{net_forward.1} parent=11 // pred_region
          _
        $region24: #{net_forward.1} parent=11 // pred_fallthru
          _
        // Predicated region
        $region25: #{net_forward.1} parent=11 // pred_check
          %p188 = pneg %p138
        $region26: #{net_forward.1} parent=11 // pred_check_branch
          %190 = sbr.rel (%p188) target = $region28
        $region27: #{net_forward.1} parent=11 // pred_region
          _
        $region28: #{net_forward.1} parent=11 // pred_fallthru
          _
      $region12: #{net_forward.1} parent=5 // pred_fallthru
        _
      %p191 = scmp.lt.s32.totalorder %s14, 4
      // Predicated region
      $region29: #{net_forward.1} parent=5 // pred_check
        %p192 = pneg %p191
      $region30: #{net_forward.1} parent=5 // pred_check_branch
        %194 = sbr.rel (%p192) target = $region32
      $region31: #{net_forward.1} parent=5 // pred_region
        // Predicated region
        $region33: #{net_forward.1} parent=31 // pred_check
          %p195 = pneg %p48
        $region34: #{net_forward.1} parent=31 // pred_check_branch
          %197 = sbr.rel (%p195) target = $region36
        $region35: #{net_forward.1} parent=31 // pred_region
          %s198 = smul.u32 64, %s22
          %p199 = scmp.lt.s32.totalorder %s21, 1
          %s200 = scalar_select %p199, %s21, 1
          %p201 = scmp.lt.s32.totalorder %s198, 127
          %s202 = scalar_select %p201, %s198, 127
          %s203 = smul.addr %s200, 128
          %s204 = sadd.s32 %s202, %s203
          %s205 = smul.addr %s204, 4
          %s206 = scalar_lea.vmem %s0, %s205
          %s207 = smul.u32 64, %s22
        $region36: #{net_forward.1} parent=31 // pred_fallthru
          _
      $region32: #{net_forward.1} parent=5 // pred_fallthru
        _
      %p208 = scmp.le.s32.totalorder 1, %s14
      %p209 = scmp.lt.s32.totalorder %s14, 5
      %p210 = pnand %p208, %p209
      %p211 = pneg %p210
      // Predicated region
      $region37: #{net_forward.1} parent=5 // pred_check
        _
      $region38: #{net_forward.1} parent=5 // pred_check_branch
        %213 = sbr.rel (%p210) target = $region40
      $region39: #{net_forward.1} parent=5 // pred_region
        %s214 = ssub.s32 %s14, 1
        %s215 = smul.u32 64, %s24
        %p216 = scmp.lt.s32.totalorder %s23, 1
        %s217 = scalar_select %p216, %s23, 1
        %p218 = scmp.lt.s32.totalorder %s215, 127
        %s219 = scalar_select %p218, %s215, 127
        %s220 = smul.addr %s217, 128
        %s221 = sadd.s32 %s219, %s220
        %s222 = smul.addr %s221, 4
        %s223 = scalar_lea.vmem %s0, %s222
        %p224 = pneg %p54
        %p225 = pneg %p51
        %p226 = pneg %p75
        %p227 = pneg %p72
        %p228 = pneg %p96
        %p229 = pneg %p93
        %p230 = pneg %p117
        %p231 = pneg %p114
        %p232 = pneg %p138
        %p233 = pneg %p135
        %p234 = pneg %p164
        %p235 = pneg %p161
        %s236 = sand.u32 %s151, 1
        %s237 = scalar_lea.sflag [#allocation4], %s236
        %s238 = sand.u32 %s151, 1
        %s239 = scalar_lea.vmem [#allocation3], %s238
        %s240 = smul.u32 64, %s24
        %p241 = scmp.lt.s32.totalorder %s23, 1
        %s242 = scalar_select %p241, %s23, 1
        %p243 = scmp.lt.s32.totalorder %s240, 127
        %s244 = scalar_select %p243, %s240, 127
        %s245 = smul.addr %s242, 128
        %s246 = sadd.s32 %s244, %s245
        %s247 = smul.addr %s246, 4
        %s248 = scalar_lea.vmem %s0, %s247
        %s249 = smul.u32 64, %s24
        %p251 = scmp.eq.s32.totalorder %s24, 0
        // Predicated region
        $region41: #{net_forward.1} parent=39 // pred_check
          %p252 = pneg %p251
        $region42: #{net_forward.1} parent=39 // pred_check_branch
          %254 = sbr.rel (%p252) target = $region44
        $region43: #{net_forward.1} parent=39 // pred_region
          %255 = vst [vmem:[#allocation2] sm:$0x1] 0.0
        $region44: #{net_forward.1} parent=39 // pred_fallthru
          _
        %v256 = vld [vmem:[%s248] sm:$0xf]
        %v257 = vld [vmem:[%s248 + $0x4] sm:$0xf]
        %v258 = vld [vmem:[%s248 + $0x8] sm:$0xf]
        %v259 = vld [vmem:[%s248 + $0xc] sm:$0xf]
        %v260 = vld [vmem:[%s248 + $0x10] sm:$0xf]
        %v261 = vld [vmem:[%s248 + $0x14] sm:$0xf]
        %v262 = vld [vmem:[%s248 + $0x18] sm:$0xf]
        %v263 = vld [vmem:[%s248 + $0x1c] sm:$0xf]
        %v264 = vld [vmem:[%s248 + $0x20] sm:$0xf]
        %v265 = vld [vmem:[%s248 + $0x24] sm:$0xf]
        %v266 = vld [vmem:[%s248 + $0x28] sm:$0xf]
        %v267 = vld [vmem:[%s248 + $0x2c] sm:$0xf]
        %v268 = vld [vmem:[%s248 + $0x30] sm:$0xf]
        %v269 = vld [vmem:[%s248 + $0x34] sm:$0xf]
        %v270 = vld [vmem:[%s248 + $0x38] sm:$0xf]
        %v271 = vld [vmem:[%s248 + $0x3c] sm:$0xf]
        %v272 = vld [vmem:[%s248 + $0x40] sm:$0xf]
        %v273 = vld [vmem:[%s248 + $0x44] sm:$0xf]
        %v274 = vld [vmem:[%s248 + $0x48] sm:$0xf]
        %v275 = vld [vmem:[%s248 + $0x4c] sm:$0xf]
        %v276 = vld [vmem:[%s248 + $0x50] sm:$0xf]
        %v277 = vld [vmem:[%s248 + $0x54] sm:$0xf]
        %v278 = vld [vmem:[%s248 + $0x58] sm:$0xf]
        %v279 = vld [vmem:[%s248 + $0x5c] sm:$0xf]
        %v280 = vld [vmem:[%s248 + $0x60] sm:$0xf]
        %v281 = vld [vmem:[%s248 + $0x64] sm:$0xf]
        %v282 = vld [vmem:[%s248 + $0x68] sm:$0xf]
        %v283 = vld [vmem:[%s248 + $0x6c] sm:$0xf]
        %v284 = vld [vmem:[%s248 + $0x70] sm:$0xf]
        %v285 = vld [vmem:[%s248 + $0x74] sm:$0xf]
        %v286 = vld [vmem:[%s248 + $0x78] sm:$0xf]
        %v287 = vld [vmem:[%s248 + $0x7c] sm:$0xf]
        %v288 = vld [vmem:[%s248 + $0x80] sm:$0xf]
        %v289 = vld [vmem:[%s248 + $0x84] sm:$0xf]
        %v290 = vld [vmem:[%s248 + $0x88] sm:$0xf]
        %v291 = vld [vmem:[%s248 + $0x8c] sm:$0xf]
        %v292 = vld [vmem:[%s248 + $0x90] sm:$0xf]
        %v293 = vld [vmem:[%s248 + $0x94] sm:$0xf]
        %v294 = vld [vmem:[%s248 + $0x98] sm:$0xf]
        %v295 = vld [vmem:[%s248 + $0x9c] sm:$0xf]
        %v296 = vld [vmem:[%s248 + $0xa0] sm:$0xf]
        %v297 = vld [vmem:[%s248 + $0xa4] sm:$0xf]
        %v298 = vld [vmem:[%s248 + $0xa8] sm:$0xf]
        %v299 = vld [vmem:[%s248 + $0xac] sm:$0xf]
        %v300 = vld [vmem:[%s248 + $0xb0] sm:$0xf]
        %v301 = vld [vmem:[%s248 + $0xb4] sm:$0xf]
        %v302 = vld [vmem:[%s248 + $0xb8] sm:$0xf]
        %v303 = vld [vmem:[%s248 + $0xbc] sm:$0xf]
        %v304 = vld [vmem:[%s248 + $0xc0] sm:$0xf]
        %v305 = vld [vmem:[%s248 + $0xc4] sm:$0xf]
        %v306 = vld [vmem:[%s248 + $0xc8] sm:$0xf]
        %v307 = vld [vmem:[%s248 + $0xcc] sm:$0xf]
        %v308 = vld [vmem:[%s248 + $0xd0] sm:$0xf]
        %v309 = vld [vmem:[%s248 + $0xd4] sm:$0xf]
        %v310 = vld [vmem:[%s248 + $0xd8] sm:$0xf]
        %v311 = vld [vmem:[%s248 + $0xdc] sm:$0xf]
        %v312 = vld [vmem:[%s248 + $0xe0] sm:$0xf]
        %v313 = vld [vmem:[%s248 + $0xe4] sm:$0xf]
        %v314 = vld [vmem:[%s248 + $0xe8] sm:$0xf]
        %v315 = vld [vmem:[%s248 + $0xec] sm:$0xf]
        %v316 = vld [vmem:[%s248 + $0xf0] sm:$0xf]
        %v317 = vld [vmem:[%s248 + $0xf4] sm:$0xf]
        %v318 = vld [vmem:[%s248 + $0xf8] sm:$0xf]
        %v319 = vld [vmem:[%s248 + $0xfc] sm:$0xf]
        %v320 = vld [vmem:[%s1] sm:$0xf]
        %v321 = vld [vmem:[%s1 + $0x4] sm:$0xf]
        %v322 = vld [vmem:[%s1 + $0x8] sm:$0xf]
        %v323 = vld [vmem:[%s1 + $0xc] sm:$0xf]
        %v324 = vld [vmem:[%s2] sm:$0x1]
        %v326 = vlaneseq
        %v327 = vshrl.u32 %v326, 7
        %v328 = vsub.s32 0, %v327
        %v329 = vrot.slane %v324, %v328
        %v395 = vunpack.c.l.b16 %v256
        %v396 = vunpack.c.l.b16 %v257
        %v397 = vunpack.c.l.b16 %v258
        %v398 = vunpack.c.l.b16 %v259
        %v399 = vunpack.c.l.b16 %v260
        %v400 = vunpack.c.l.b16 %v261
        %v401 = vunpack.c.l.b16 %v262
        %v402 = vunpack.c.l.b16 %v263
        %v403 = vunpack.c.l.b16 %v264
        %v404 = vunpack.c.l.b16 %v265
        %v405 = vunpack.c.l.b16 %v266
        %v406 = vunpack.c.l.b16 %v267
        %v407 = vunpack.c.l.b16 %v268
        %v408 = vunpack.c.l.b16 %v269
        %v409 = vunpack.c.l.b16 %v270
        %v410 = vunpack.c.l.b16 %v271
        %v411 = vunpack.c.l.b16 %v272
        %v412 = vunpack.c.l.b16 %v273
        %v413 = vunpack.c.l.b16 %v274
        %v414 = vunpack.c.l.b16 %v275
        %v415 = vunpack.c.l.b16 %v276
        %v416 = vunpack.c.l.b16 %v277
        %v417 = vunpack.c.l.b16 %v278
        %v418 = vunpack.c.l.b16 %v279
        %v419 = vunpack.c.l.b16 %v280
        %v420 = vunpack.c.l.b16 %v281
        %v421 = vunpack.c.l.b16 %v282
        %v422 = vunpack.c.l.b16 %v283
        %v423 = vunpack.c.l.b16 %v284
        %v424 = vunpack.c.l.b16 %v285
        %v425 = vunpack.c.l.b16 %v286
        %v426 = vunpack.c.l.b16 %v287
        %v427 = vunpack.c.l.b16 %v288
        %v428 = vunpack.c.l.b16 %v289
        %v429 = vunpack.c.l.b16 %v290
        %v430 = vunpack.c.l.b16 %v291
        %v431 = vunpack.c.l.b16 %v292
        %v432 = vunpack.c.l.b16 %v293
        %v433 = vunpack.c.l.b16 %v294
        %v434 = vunpack.c.l.b16 %v295
        %v435 = vunpack.c.l.b16 %v296
        %v436 = vunpack.c.l.b16 %v297
        %v437 = vunpack.c.l.b16 %v298
        %v438 = vunpack.c.l.b16 %v299
        %v439 = vunpack.c.l.b16 %v300
        %v440 = vunpack.c.l.b16 %v301
        %v441 = vunpack.c.l.b16 %v302
        %v442 = vunpack.c.l.b16 %v303
        %v443 = vunpack.c.l.b16 %v304
        %v444 = vunpack.c.l.b16 %v305
        %v445 = vunpack.c.l.b16 %v306
        %v446 = vunpack.c.l.b16 %v307
        %v447 = vunpack.c.l.b16 %v308
        %v448 = vunpack.c.l.b16 %v309
        %v449 = vunpack.c.l.b16 %v310
        %v450 = vunpack.c.l.b16 %v311
        %v451 = vunpack.c.l.b16 %v312
        %v452 = vunpack.c.l.b16 %v313
        %v453 = vunpack.c.l.b16 %v314
        %v454 = vunpack.c.l.b16 %v315
        %v455 = vunpack.c.l.b16 %v316
        %v456 = vunpack.c.l.b16 %v317
        %v457 = vunpack.c.l.b16 %v318
        %v458 = vunpack.c.l.b16 %v319
        %v459 = vpack.c.b16 %v396, %v395
        %v460 = vpack.c.b16 %v398, %v397
        %v461 = vpack.c.b16 %v400, %v399
        %v462 = vpack.c.b16 %v402, %v401
        %v463 = vpack.c.b16 %v404, %v403
        %v464 = vpack.c.b16 %v406, %v405
        %v465 = vpack.c.b16 %v408, %v407
        %v466 = vpack.c.b16 %v410, %v409
        %v467 = vpack.c.b16 %v412, %v411
        %v468 = vpack.c.b16 %v414, %v413
        %v469 = vpack.c.b16 %v416, %v415
        %v470 = vpack.c.b16 %v418, %v417
        %v471 = vpack.c.b16 %v420, %v419
        %v472 = vpack.c.b16 %v422, %v421
        %v473 = vpack.c.b16 %v424, %v423
        %v474 = vpack.c.b16 %v426, %v425
        %v475 = vpack.c.b16 %v428, %v427
        %v476 = vpack.c.b16 %v430, %v429
        %v477 = vpack.c.b16 %v432, %v431
        %v478 = vpack.c.b16 %v434, %v433
        %v479 = vpack.c.b16 %v436, %v435
        %v480 = vpack.c.b16 %v438, %v437
        %v481 = vpack.c.b16 %v440, %v439
        %v482 = vpack.c.b16 %v442, %v441
        %v483 = vpack.c.b16 %v444, %v443
        %v484 = vpack.c.b16 %v446, %v445
        %v485 = vpack.c.b16 %v448, %v447
        %v486 = vpack.c.b16 %v450, %v449
        %v487 = vpack.c.b16 %v452, %v451
        %v488 = vpack.c.b16 %v454, %v453
        %v489 = vpack.c.b16 %v456, %v455
        %v490 = vpack.c.b16 %v458, %v457
        %v495 = vunpack.c.l.b16 %v320
        %v496 = vunpack.c.l.b16 %v321
        %v497 = vunpack.c.l.b16 %v322
        %v498 = vunpack.c.l.b16 %v323
        %v499 = vpack.c.b16 %v496, %v495
        %v500 = vpack.c.b16 %v498, %v497
        %vm503 = vcmask 261120
        %v505 = vsel %vm503, %v459, 0
        %v508 = vsel %vm503, %v460, 0
        %v511 = vsel %vm503, %v461, 0
        %v514 = vsel %vm503, %v462, 0
        %v517 = vsel %vm503, %v463, 0
        %v520 = vsel %vm503, %v464, 0
        %v523 = vsel %vm503, %v465, 0
        %v526 = vsel %vm503, %v466, 0
        %v529 = vsel %vm503, %v467, 0
        %v532 = vsel %vm503, %v468, 0
        %v535 = vsel %vm503, %v469, 0
        %v538 = vsel %vm503, %v470, 0
        %v541 = vsel %vm503, %v471, 0
        %v544 = vsel %vm503, %v472, 0
        %v547 = vsel %vm503, %v473, 0
        %v550 = vsel %vm503, %v474, 0
        %v553 = vsel %vm503, %v475, 0
        %v556 = vsel %vm503, %v476, 0
        %v559 = vsel %vm503, %v477, 0
        %v562 = vsel %vm503, %v478, 0
        %v565 = vsel %vm503, %v479, 0
        %v568 = vsel %vm503, %v480, 0
        %v571 = vsel %vm503, %v481, 0
        %v574 = vsel %vm503, %v482, 0
        %v577 = vsel %vm503, %v483, 0
        %v580 = vsel %vm503, %v484, 0
        %v583 = vsel %vm503, %v485, 0
        %v586 = vsel %vm503, %v486, 0
        %v589 = vsel %vm503, %v487, 0
        %v592 = vsel %vm503, %v488, 0
        %v595 = vsel %vm503, %v489, 0
        %v598 = vsel %vm503, %v490, 0
        %600 = vmatprep.subr.bf16.mxu0 0
        %601 = vmatpush1.bf16.msra.mxu0 0
        %602 = vmatprep.subr.bf16.mxu0 0
        %603 = vmatpush1.bf16.msra.mxu0 0
        %604 = vmatprep.subr.bf16.mxu0 0
        %605 = vmatpush1.bf16.msra.mxu0 0
        %606 = vmatprep.subr.bf16.mxu0 0
        %607 = vmatpush1.bf16.msra.mxu0 0
        %608 = vmatprep.subr.bf16.mxu0 0
        %609 = vmatpush1.bf16.msra.mxu0 0
        %610 = vmatprep.subr.bf16.mxu0 0
        %611 = vmatpush1.bf16.msra.mxu0 0
        %612 = vmatprep.subr.bf16.mxu0 0
        %613 = vmatpush1.bf16.msra.mxu0 %v500
        %614 = vmatprep.subr.bf16.mxu0 0
        %615 = vmatpush1.bf16.msra.mxu0 %v499
        %616 = vmatprep.subr.bf16.mxu0 0
        %617 = vmatpush2.bf16.msra.mxu0 0
        %618 = vmatprep.subr.bf16.mxu0 0
        %619 = vmatpush2.bf16.msra.mxu0 0
        %620 = vmatprep.subr.bf16.mxu0 0
        %621 = vmatpush2.bf16.msra.mxu0 0
        %622 = vmatprep.subr.bf16.mxu0 0
        %623 = vmatpush2.bf16.msra.mxu0 0
        %624 = vmatprep.subr.bf16.mxu0 0
        %625 = vmatpush2.bf16.msra.mxu0 0
        %626 = vmatprep.subr.bf16.mxu0 0
        %627 = vmatpush2.bf16.msra.mxu0 0
        %628 = vmatprep.subr.bf16.mxu0 0
        %629 = vmatpush2.bf16.msra.mxu0 0
        %630 = vmatprep.subr.bf16.mxu0 0
        %631 = vmatpush2.bf16.msra.mxu0 0
        %632 = vmatprep.mubr.bf16.mxu0 0
        %633 = vmatmul.mubr.bf16.gmra.mxu0 %v505
        %v634 = vpop.f32.mrf.mxu0
        %v635 = vadd.f32 %v329, %v634
        %v636 = vpop.f32.mrf.mxu0
        %v637 = vpop.f32.mrf.mxu0
        %v638 = vadd.f32 %v329, %v637
        %v639 = vpop.f32.mrf.mxu0
        %640 = vmatprep.mubr.bf16.mxu0 0
        %641 = vmatmul.mubr.bf16.gmra.mxu0 %v508
        %v642 = vpop.f32.mrf.mxu0
        %v643 = vadd.f32 %v329, %v642
        %v644 = vpop.f32.mrf.mxu0
        %v645 = vpop.f32.mrf.mxu0
        %v646 = vadd.f32 %v329, %v645
        %v647 = vpop.f32.mrf.mxu0
        %648 = vmatprep.mubr.bf16.mxu0 0
        %649 = vmatmul.mubr.bf16.gmra.mxu0 %v511
        %v650 = vpop.f32.mrf.mxu0
        %v651 = vadd.f32 %v329, %v650
        %v652 = vpop.f32.mrf.mxu0
        %v653 = vpop.f32.mrf.mxu0
        %v654 = vadd.f32 %v329, %v653
        %v655 = vpop.f32.mrf.mxu0
        %656 = vmatprep.mubr.bf16.mxu0 0
        %657 = vmatmul.mubr.bf16.gmra.mxu0 %v514
        %v658 = vpop.f32.mrf.mxu0
        %v659 = vadd.f32 %v329, %v658
        %v660 = vpop.f32.mrf.mxu0
        %v661 = vpop.f32.mrf.mxu0
        %v662 = vadd.f32 %v329, %v661
        %v663 = vpop.f32.mrf.mxu0
        %664 = vmatprep.mubr.bf16.mxu0 0
        %665 = vmatmul.mubr.bf16.gmra.mxu0 %v517
        %v666 = vpop.f32.mrf.mxu0
        %v667 = vadd.f32 %v329, %v666
        %v668 = vpop.f32.mrf.mxu0
        %v669 = vpop.f32.mrf.mxu0
        %v670 = vadd.f32 %v329, %v669
        %v671 = vpop.f32.mrf.mxu0
        %672 = vmatprep.mubr.bf16.mxu0 0
        %673 = vmatmul.mubr.bf16.gmra.mxu0 %v520
        %v674 = vpop.f32.mrf.mxu0
        %v675 = vadd.f32 %v329, %v674
        %v676 = vpop.f32.mrf.mxu0
        %v677 = vpop.f32.mrf.mxu0
        %v678 = vadd.f32 %v329, %v677
        %v679 = vpop.f32.mrf.mxu0
        %680 = vmatprep.mubr.bf16.mxu0 0
        %681 = vmatmul.mubr.bf16.gmra.mxu0 %v523
        %v682 = vpop.f32.mrf.mxu0
        %v683 = vadd.f32 %v329, %v682
        %v684 = vpop.f32.mrf.mxu0
        %v685 = vpop.f32.mrf.mxu0
        %v686 = vadd.f32 %v329, %v685
        %v687 = vpop.f32.mrf.mxu0
        %688 = vmatprep.mubr.bf16.mxu0 0
        %689 = vmatmul.mubr.bf16.gmra.mxu0 %v526
        %v690 = vpop.f32.mrf.mxu0
        %v691 = vadd.f32 %v329, %v690
        %v692 = vpop.f32.mrf.mxu0
        %v693 = vpop.f32.mrf.mxu0
        %v694 = vadd.f32 %v329, %v693
        %v695 = vpop.f32.mrf.mxu0
        %696 = vmatprep.mubr.bf16.mxu0 0
        %697 = vmatmul.mubr.bf16.gmra.mxu0 %v529
        %v698 = vpop.f32.mrf.mxu0
        %v699 = vadd.f32 %v329, %v698
        %v700 = vpop.f32.mrf.mxu0
        %v701 = vpop.f32.mrf.mxu0
        %v702 = vadd.f32 %v329, %v701
        %v703 = vpop.f32.mrf.mxu0
        %704 = vmatprep.mubr.bf16.mxu0 0
        %705 = vmatmul.mubr.bf16.gmra.mxu0 %v532
        %v706 = vpop.f32.mrf.mxu0
        %v707 = vadd.f32 %v329, %v706
        %v708 = vpop.f32.mrf.mxu0
        %v709 = vpop.f32.mrf.mxu0
        %v710 = vadd.f32 %v329, %v709
        %v711 = vpop.f32.mrf.mxu0
        %712 = vmatprep.mubr.bf16.mxu0 0
        %713 = vmatmul.mubr.bf16.gmra.mxu0 %v535
        %v714 = vpop.f32.mrf.mxu0
        %v715 = vadd.f32 %v329, %v714
        %v716 = vpop.f32.mrf.mxu0
        %v717 = vpop.f32.mrf.mxu0
        %v718 = vadd.f32 %v329, %v717
        %v719 = vpop.f32.mrf.mxu0
        %720 = vmatprep.mubr.bf16.mxu0 0
        %721 = vmatmul.mubr.bf16.gmra.mxu0 %v538
        %v722 = vpop.f32.mrf.mxu0
        %v723 = vadd.f32 %v329, %v722
        %v724 = vpop.f32.mrf.mxu0
        %v725 = vpop.f32.mrf.mxu0
        %v726 = vadd.f32 %v329, %v725
        %v727 = vpop.f32.mrf.mxu0
        %728 = vmatprep.mubr.bf16.mxu0 0
        %729 = vmatmul.mubr.bf16.gmra.mxu0 %v541
        %v730 = vpop.f32.mrf.mxu0
        %v731 = vadd.f32 %v329, %v730
        %v732 = vpop.f32.mrf.mxu0
        %v733 = vpop.f32.mrf.mxu0
        %v734 = vadd.f32 %v329, %v733
        %v735 = vpop.f32.mrf.mxu0
        %736 = vmatprep.mubr.bf16.mxu0 0
        %737 = vmatmul.mubr.bf16.gmra.mxu0 %v544
        %v738 = vpop.f32.mrf.mxu0
        %v739 = vadd.f32 %v329, %v738
        %v740 = vpop.f32.mrf.mxu0
        %v741 = vpop.f32.mrf.mxu0
        %v742 = vadd.f32 %v329, %v741
        %v743 = vpop.f32.mrf.mxu0
        %744 = vmatprep.mubr.bf16.mxu0 0
        %745 = vmatmul.mubr.bf16.gmra.mxu0 %v547
        %v746 = vpop.f32.mrf.mxu0
        %v747 = vadd.f32 %v329, %v746
        %v748 = vpop.f32.mrf.mxu0
        %v749 = vpop.f32.mrf.mxu0
        %v750 = vadd.f32 %v329, %v749
        %v751 = vpop.f32.mrf.mxu0
        %752 = vmatprep.mubr.bf16.mxu0 0
        %753 = vmatmul.mubr.bf16.gmra.mxu0 %v550
        %v754 = vpop.f32.mrf.mxu0
        %v755 = vadd.f32 %v329, %v754
        %v756 = vpop.f32.mrf.mxu0
        %v757 = vpop.f32.mrf.mxu0
        %v758 = vadd.f32 %v329, %v757
        %v759 = vpop.f32.mrf.mxu0
        %760 = vmatprep.mubr.bf16.mxu0 0
        %761 = vmatmul.mubr.bf16.gmra.mxu0 %v553
        %v762 = vpop.f32.mrf.mxu0
        %v763 = vadd.f32 %v329, %v762
        %v764 = vpop.f32.mrf.mxu0
        %v765 = vpop.f32.mrf.mxu0
        %v766 = vadd.f32 %v329, %v765
        %v767 = vpop.f32.mrf.mxu0
        %768 = vmatprep.mubr.bf16.mxu0 0
        %769 = vmatmul.mubr.bf16.gmra.mxu0 %v556
        %v770 = vpop.f32.mrf.mxu0
        %v771 = vadd.f32 %v329, %v770
        %v772 = vpop.f32.mrf.mxu0
        %v773 = vpop.f32.mrf.mxu0
        %v774 = vadd.f32 %v329, %v773
        %v775 = vpop.f32.mrf.mxu0
        %776 = vmatprep.mubr.bf16.mxu0 0
        %777 = vmatmul.mubr.bf16.gmra.mxu0 %v559
        %v778 = vpop.f32.mrf.mxu0
        %v779 = vadd.f32 %v329, %v778
        %v780 = vpop.f32.mrf.mxu0
        %v781 = vpop.f32.mrf.mxu0
        %v782 = vadd.f32 %v329, %v781
        %v783 = vpop.f32.mrf.mxu0
        %784 = vmatprep.mubr.bf16.mxu0 0
        %785 = vmatmul.mubr.bf16.gmra.mxu0 %v562
        %v786 = vpop.f32.mrf.mxu0
        %v787 = vadd.f32 %v329, %v786
        %v788 = vpop.f32.mrf.mxu0
        %v789 = vpop.f32.mrf.mxu0
        %v790 = vadd.f32 %v329, %v789
        %v791 = vpop.f32.mrf.mxu0
        %792 = vmatprep.mubr.bf16.mxu0 0
        %793 = vmatmul.mubr.bf16.gmra.mxu0 %v565
        %v794 = vpop.f32.mrf.mxu0
        %v795 = vadd.f32 %v329, %v794
        %v796 = vpop.f32.mrf.mxu0
        %v797 = vpop.f32.mrf.mxu0
        %v798 = vadd.f32 %v329, %v797
        %v799 = vpop.f32.mrf.mxu0
        %800 = vmatprep.mubr.bf16.mxu0 0
        %801 = vmatmul.mubr.bf16.gmra.mxu0 %v568
        %v802 = vpop.f32.mrf.mxu0
        %v803 = vadd.f32 %v329, %v802
        %v804 = vpop.f32.mrf.mxu0
        %v805 = vpop.f32.mrf.mxu0
        %v806 = vadd.f32 %v329, %v805
        %v807 = vpop.f32.mrf.mxu0
        %808 = vmatprep.mubr.bf16.mxu0 0
        %809 = vmatmul.mubr.bf16.gmra.mxu0 %v571
        %v810 = vpop.f32.mrf.mxu0
        %v811 = vadd.f32 %v329, %v810
        %v812 = vpop.f32.mrf.mxu0
        %v813 = vpop.f32.mrf.mxu0
        %v814 = vadd.f32 %v329, %v813
        %v815 = vpop.f32.mrf.mxu0
        %816 = vmatprep.mubr.bf16.mxu0 0
        %817 = vmatmul.mubr.bf16.gmra.mxu0 %v574
        %v818 = vpop.f32.mrf.mxu0
        %v819 = vadd.f32 %v329, %v818
        %v820 = vpop.f32.mrf.mxu0
        %v821 = vpop.f32.mrf.mxu0
        %v822 = vadd.f32 %v329, %v821
        %v823 = vpop.f32.mrf.mxu0
        %824 = vmatprep.mubr.bf16.mxu0 0
        %825 = vmatmul.mubr.bf16.gmra.mxu0 %v577
        %v826 = vpop.f32.mrf.mxu0
        %v827 = vadd.f32 %v329, %v826
        %v828 = vpop.f32.mrf.mxu0
        %v829 = vpop.f32.mrf.mxu0
        %v830 = vadd.f32 %v329, %v829
        %v831 = vpop.f32.mrf.mxu0
        %832 = vmatprep.mubr.bf16.mxu0 0
        %833 = vmatmul.mubr.bf16.gmra.mxu0 %v580
        %v834 = vpop.f32.mrf.mxu0
        %v835 = vadd.f32 %v329, %v834
        %v836 = vpop.f32.mrf.mxu0
        %v837 = vpop.f32.mrf.mxu0
        %v838 = vadd.f32 %v329, %v837
        %v839 = vpop.f32.mrf.mxu0
        %840 = vmatprep.mubr.bf16.mxu0 0
        %841 = vmatmul.mubr.bf16.gmra.mxu0 %v583
        %v842 = vpop.f32.mrf.mxu0
        %v843 = vadd.f32 %v329, %v842
        %v844 = vpop.f32.mrf.mxu0
        %v845 = vpop.f32.mrf.mxu0
        %v846 = vadd.f32 %v329, %v845
        %v847 = vpop.f32.mrf.mxu0
        %848 = vmatprep.mubr.bf16.mxu0 0
        %849 = vmatmul.mubr.bf16.gmra.mxu0 %v586
        %v850 = vpop.f32.mrf.mxu0
        %v851 = vadd.f32 %v329, %v850
        %v852 = vpop.f32.mrf.mxu0
        %v853 = vpop.f32.mrf.mxu0
        %v854 = vadd.f32 %v329, %v853
        %v855 = vpop.f32.mrf.mxu0
        %856 = vmatprep.mubr.bf16.mxu0 0
        %857 = vmatmul.mubr.bf16.gmra.mxu0 %v589
        %v858 = vpop.f32.mrf.mxu0
        %v859 = vadd.f32 %v329, %v858
        %v860 = vpop.f32.mrf.mxu0
        %v861 = vpop.f32.mrf.mxu0
        %v862 = vadd.f32 %v329, %v861
        %v863 = vpop.f32.mrf.mxu0
        %864 = vmatprep.mubr.bf16.mxu0 0
        %865 = vmatmul.mubr.bf16.gmra.mxu0 %v592
        %v866 = vpop.f32.mrf.mxu0
        %v867 = vadd.f32 %v329, %v866
        %v868 = vpop.f32.mrf.mxu0
        %v869 = vpop.f32.mrf.mxu0
        %v870 = vadd.f32 %v329, %v869
        %v871 = vpop.f32.mrf.mxu0
        %872 = vmatprep.mubr.bf16.mxu0 0
        %873 = vmatmul.mubr.bf16.gmra.mxu0 %v595
        %v874 = vpop.f32.mrf.mxu0
        %v875 = vadd.f32 %v329, %v874
        %v876 = vpop.f32.mrf.mxu0
        %v877 = vpop.f32.mrf.mxu0
        %v878 = vadd.f32 %v329, %v877
        %v879 = vpop.f32.mrf.mxu0
        %880 = vmatprep.mubr.bf16.mxu0 0
        %881 = vmatmul.mubr.bf16.gmra.mxu0 %v598
        %v882 = vpop.f32.mrf.mxu0
        %v883 = vadd.f32 %v329, %v882
        %v884 = vpop.f32.mrf.mxu0
        %v885 = vpop.f32.mrf.mxu0
        %v886 = vadd.f32 %v329, %v885
        %v887 = vpop.f32.mrf.mxu0
        %888 = vdwg.mxu0
        %v889 = vmax.f32 %v635, 0.0
        %v890 = vmax.f32 %v638, 0.0
        %v891 = vmax.f32 %v643, 0.0
        %v892 = vmax.f32 %v646, 0.0
        %v893 = vmax.f32 %v651, 0.0
        %v894 = vmax.f32 %v654, 0.0
        %v895 = vmax.f32 %v659, 0.0
        %v896 = vmax.f32 %v662, 0.0
        %v897 = vmax.f32 %v667, 0.0
        %v898 = vmax.f32 %v670, 0.0
        %v899 = vmax.f32 %v675, 0.0
        %v900 = vmax.f32 %v678, 0.0
        %v901 = vmax.f32 %v683, 0.0
        %v902 = vmax.f32 %v686, 0.0
        %v903 = vmax.f32 %v691, 0.0
        %v904 = vmax.f32 %v694, 0.0
        %v905 = vmax.f32 %v699, 0.0
        %v906 = vmax.f32 %v702, 0.0
        %v907 = vmax.f32 %v707, 0.0
        %v908 = vmax.f32 %v710, 0.0
        %v909 = vmax.f32 %v715, 0.0
        %v910 = vmax.f32 %v718, 0.0
        %v911 = vmax.f32 %v723, 0.0
        %v912 = vmax.f32 %v726, 0.0
        %v913 = vmax.f32 %v731, 0.0
        %v914 = vmax.f32 %v734, 0.0
        %v915 = vmax.f32 %v739, 0.0
        %v916 = vmax.f32 %v742, 0.0
        %v917 = vmax.f32 %v747, 0.0
        %v918 = vmax.f32 %v750, 0.0
        %v919 = vmax.f32 %v755, 0.0
        %v920 = vmax.f32 %v758, 0.0
        %v921 = vmax.f32 %v763, 0.0
        %v922 = vmax.f32 %v766, 0.0
        %v923 = vmax.f32 %v771, 0.0
        %v924 = vmax.f32 %v774, 0.0
        %v925 = vmax.f32 %v779, 0.0
        %v926 = vmax.f32 %v782, 0.0
        %v927 = vmax.f32 %v787, 0.0
        %v928 = vmax.f32 %v790, 0.0
        %v929 = vmax.f32 %v795, 0.0
        %v930 = vmax.f32 %v798, 0.0
        %v931 = vmax.f32 %v803, 0.0
        %v932 = vmax.f32 %v806, 0.0
        %v933 = vmax.f32 %v811, 0.0
        %v934 = vmax.f32 %v814, 0.0
        %v935 = vmax.f32 %v819, 0.0
        %v936 = vmax.f32 %v822, 0.0
        %v937 = vmax.f32 %v827, 0.0
        %v938 = vmax.f32 %v830, 0.0
        %v939 = vmax.f32 %v835, 0.0
        %v940 = vmax.f32 %v838, 0.0
        %v941 = vmax.f32 %v843, 0.0
        %v942 = vmax.f32 %v846, 0.0
        %v943 = vmax.f32 %v851, 0.0
        %v944 = vmax.f32 %v854, 0.0
        %v945 = vmax.f32 %v859, 0.0
        %v946 = vmax.f32 %v862, 0.0
        %v947 = vmax.f32 %v867, 0.0
        %v948 = vmax.f32 %v870, 0.0
        %v949 = vmax.f32 %v875, 0.0
        %v950 = vmax.f32 %v878, 0.0
        %v951 = vmax.f32 %v883, 0.0
        %v952 = vmax.f32 %v886, 0.0
        %v953 = vld [vmem:[#allocation2] sm:$0x1]
        %v954 = vadd.f32 %v889, %v890
        %v955 = vadd.f32 %v954, %v891
        %v956 = vadd.f32 %v955, %v892
        %v957 = vadd.f32 %v956, %v893
        %v958 = vadd.f32 %v957, %v894
        %v959 = vadd.f32 %v958, %v895
        %v960 = vadd.f32 %v959, %v896
        %v961 = vadd.f32 %v960, %v897
        %v962 = vadd.f32 %v961, %v898
        %v963 = vadd.f32 %v962, %v899
        %v964 = vadd.f32 %v963, %v900
        %v965 = vadd.f32 %v964, %v901
        %v966 = vadd.f32 %v965, %v902
        %v967 = vadd.f32 %v966, %v903
        %v968 = vadd.f32 %v967, %v904
        %v969 = vadd.f32 %v968, %v905
        %v970 = vadd.f32 %v969, %v906
        %v971 = vadd.f32 %v970, %v907
        %v972 = vadd.f32 %v971, %v908
        %v973 = vadd.f32 %v972, %v909
        %v974 = vadd.f32 %v973, %v910
        %v975 = vadd.f32 %v974, %v911
        %v976 = vadd.f32 %v975, %v912
        %v977 = vadd.f32 %v976, %v913
        %v978 = vadd.f32 %v977, %v914
        %v979 = vadd.f32 %v978, %v915
        %v980 = vadd.f32 %v979, %v916
        %v981 = vadd.f32 %v980, %v917
        %v982 = vadd.f32 %v981, %v918
        %v983 = vadd.f32 %v982, %v919
        %v984 = vadd.f32 %v983, %v920
        %v985 = vadd.f32 %v984, %v921
        %v986 = vadd.f32 %v985, %v922
        %v987 = vadd.f32 %v986, %v923
        %v988 = vadd.f32 %v987, %v924
        %v989 = vadd.f32 %v988, %v925
        %v990 = vadd.f32 %v989, %v926
        %v991 = vadd.f32 %v990, %v927
        %v992 = vadd.f32 %v991, %v928
        %v993 = vadd.f32 %v992, %v929
        %v994 = vadd.f32 %v993, %v930
        %v995 = vadd.f32 %v994, %v931
        %v996 = vadd.f32 %v995, %v932
        %v997 = vadd.f32 %v996, %v933
        %v998 = vadd.f32 %v997, %v934
        %v999 = vadd.f32 %v998, %v935
        %v1000 = vadd.f32 %v999, %v936
        %v1001 = vadd.f32 %v1000, %v937
        %v1002 = vadd.f32 %v1001, %v938
        %v1003 = vadd.f32 %v1002, %v939
        %v1004 = vadd.f32 %v1003, %v940
        %v1005 = vadd.f32 %v1004, %v941
        %v1006 = vadd.f32 %v1005, %v942
        %v1007 = vadd.f32 %v1006, %v943
        %v1008 = vadd.f32 %v1007, %v944
        %v1009 = vadd.f32 %v1008, %v945
        %v1010 = vadd.f32 %v1009, %v946
        %v1011 = vadd.f32 %v1010, %v947
        %v1012 = vadd.f32 %v1011, %v948
        %v1013 = vadd.f32 %v1012, %v949
        %v1014 = vadd.f32 %v1013, %v950
        %v1015 = vadd.f32 %v1014, %v951
        %v1016 = vadd.f32 %v1015, %v952
        %v1017 = vrot.slane %v1016, 4
        %v1018 = vadd.f32 %v1016, %v1017
        %v1019 = vrot.slane %v1018, 2
        %v1020 = vadd.f32 %v1018, %v1019
        %v1021 = vrot.slane %v1020, 1
        %v1022 = vadd.f32 %v1020, %v1021
        %v1023 = vadd.f32 %v953, %v1022
        %1024 = vst [vmem:[#allocation2] sm:$0x1] %v1023
        %p1025 = scmp.eq.s32.totalorder %s24, 1
        // Predicated region
        $region45: #{net_forward.1} parent=39 // pred_check
          %p1026 = pneg %p1025
        $region46: #{net_forward.1} parent=39 // pred_check_branch
          %1028 = sbr.rel (%p1026) target = $region48
        $region47: #{net_forward.1} parent=39 // pred_region
          %v1029 = vld [vmem:[#allocation2] sm:$0x1]
          %v1030 = vmul.f32 %v1029, 0.0009765625
          %v1031 = vld [vmem:[%s3] sm:$0xff]
          %v1032 = vld [vmem:[%s3 + $0x8] sm:$0xff]
          %v1033 = vld [vmem:[%s3 + $0x10] sm:$0xff]
          %v1034 = vld [vmem:[%s3 + $0x18] sm:$0xff]
          %v1035 = vld [vmem:[%s3 + $0x20] sm:$0xff]
          %v1036 = vld [vmem:[%s3 + $0x28] sm:$0xff]
          %v1037 = vld [vmem:[%s3 + $0x30] sm:$0xff]
          %v1038 = vld [vmem:[%s3 + $0x38] sm:$0xff]
          %v1039 = vld [vmem:[%s3 + $0x40] sm:$0xff]
          %v1040 = vld [vmem:[%s3 + $0x48] sm:$0xff]
          %v1041 = vld [vmem:[%s3 + $0x50] sm:$0xff]
          %v1042 = vld [vmem:[%s3 + $0x58] sm:$0xff]
          %v1043 = vld [vmem:[%s3 + $0x60] sm:$0xff]
          %v1044 = vld [vmem:[%s3 + $0x68] sm:$0xff]
          %v1045 = vld [vmem:[%s3 + $0x70] sm:$0xff]
          %v1046 = vld [vmem:[%s3 + $0x78] sm:$0xff]
          %v1047 = vld [vmem:[%s4] sm:$0x1]
          %1048 = vmatprep.subr.mxu0 0.0
          %1049 = vmatpush1.msra.mxu0 %v1046
          %1050 = vmatprep.subr.mxu0 0.0
          %1051 = vmatpush1.msra.mxu0 %v1045
          %1052 = vmatprep.subr.mxu0 0.0
          %1053 = vmatpush1.msra.mxu0 %v1044
          %1054 = vmatprep.subr.mxu0 0.0
          %1055 = vmatpush1.msra.mxu0 %v1043
          %1056 = vmatprep.subr.mxu0 0.0
          %1057 = vmatpush1.msra.mxu0 %v1042
          %1058 = vmatprep.subr.mxu0 0.0
          %1059 = vmatpush1.msra.mxu0 %v1041
          %1060 = vmatprep.subr.mxu0 0.0
          %1061 = vmatpush1.msra.mxu0 %v1040
          %1062 = vmatprep.subr.mxu0 0.0
          %1063 = vmatpush1.msra.mxu0 %v1039
          %1064 = vmatprep.subr.mxu0 0.0
          %1065 = vmatpush1.msra.mxu0 %v1038
          %1066 = vmatprep.subr.mxu0 0.0
          %1067 = vmatpush1.msra.mxu0 %v1037
          %1068 = vmatprep.subr.mxu0 0.0
          %1069 = vmatpush1.msra.mxu0 %v1036
          %1070 = vmatprep.subr.mxu0 0.0
          %1071 = vmatpush1.msra.mxu0 %v1035
          %1072 = vmatprep.subr.mxu0 0.0
          %1073 = vmatpush1.msra.mxu0 %v1034
          %1074 = vmatprep.subr.mxu0 0.0
          %1075 = vmatpush1.msra.mxu0 %v1033
          %1076 = vmatprep.subr.mxu0 0.0
          %1077 = vmatpush1.msra.mxu0 %v1032
          %1078 = vmatprep.subr.mxu0 0.0
          %1079 = vmatpush1.msra.mxu0 %v1031
          %1080 = vmatprep.subr.mxu0 0.0
          %1081 = vmatpush2.msra.mxu0 0.0
          %1082 = vmatprep.subr.mxu0 0.0
          %1083 = vmatpush2.msra.mxu0 0.0
          %1084 = vmatprep.subr.mxu0 0.0
          %1085 = vmatpush2.msra.mxu0 0.0
          %1086 = vmatprep.subr.mxu0 0.0
          %1087 = vmatpush2.msra.mxu0 0.0
          %1088 = vmatprep.subr.mxu0 0.0
          %1089 = vmatpush2.msra.mxu0 0.0
          %1090 = vmatprep.subr.mxu0 0.0
          %1091 = vmatpush2.msra.mxu0 0.0
          %1092 = vmatprep.subr.mxu0 0.0
          %1093 = vmatpush2.msra.mxu0 0.0
          %1094 = vmatprep.subr.mxu0 0.0
          %1095 = vmatpush2.msra.mxu0 0.0
          %1096 = vmatprep.subr.mxu0 0.0
          %1097 = vmatpush2.msra.mxu0 0.0
          %1098 = vmatprep.subr.mxu0 0.0
          %1099 = vmatpush2.msra.mxu0 0.0
          %1100 = vmatprep.subr.mxu0 0.0
          %1101 = vmatpush2.msra.mxu0 0.0
          %1102 = vmatprep.subr.mxu0 0.0
          %1103 = vmatpush2.msra.mxu0 0.0
          %1104 = vmatprep.subr.mxu0 0.0
          %1105 = vmatpush2.msra.mxu0 0.0
          %1106 = vmatprep.subr.mxu0 0.0
          %1107 = vmatpush2.msra.mxu0 0.0
          %1108 = vmatprep.subr.mxu0 0.0
          %1109 = vmatpush2.msra.mxu0 0.0
          %1110 = vmatprep.subr.mxu0 0.0
          %1111 = vmatpush2.msra.mxu0 0.0
          %1112 = vmatprep.mubr.f32.mxu0 0.0
          %1113 = vmatmul.mubr.f32.gmra.mxu0 %v1030
          %v1114 = vpop.f32.mrf.mxu0
          %v1115 = vadd.f32 %v1047, %v1114
          %v1116 = vpop.f32.mrf.mxu0
          %1117 = vdwg.mxu0
          %1118 = vst [vmem:[%s239] sm:$0x1] %v1115
        $region48: #{net_forward.1} parent=39 // pred_fallthru
          _
        %s1119 = sand.u32 %s151, 1
        %s1120 = scalar_lea.sflag [#allocation4], %s1119
        %s1121 = sand.u32 %s151, 1
        %s1122 = scalar_lea.vmem [#allocation3], %s1121
        // Predicated region
        $region49: #{net_forward.1} parent=39 // pred_check
          %p1123 = pneg %p161
        $region50: #{net_forward.1} parent=39 // pred_check_branch
          %1125 = sbr.rel (%p1123) target = $region52
        $region51: #{net_forward.1} parent=39 // pred_region
          %s1127 = ssub.s32 16, 16
          %1128 = vsyncadd %s1120, %s1127
          %s1129 = smul.addr %s23, 16
          %s1130 = scalar_lea.hbm %s5, %s1129
          %s1132 = sshll.u32 %s1122, 4
          %s1133 = int_to_ptr.vmem [resolvable:$true] %s1132
          %1135 = dma.vmem_to_hbm [thread:$0]  %s1133, 16, %s1130, %s1120
        $region52: #{net_forward.1} parent=39 // pred_fallthru
          _
      $region40: #{net_forward.1} parent=5 // pred_fallthru
        _
      %p1136 = scmp.le.s32.totalorder 2, %s14
      // Predicated region
      $region53: #{net_forward.1} parent=5 // pred_check
        %p1137 = pneg %p1136
      $region54: #{net_forward.1} parent=5 // pred_check_branch
        %1139 = sbr.rel (%p1137) target = $region56
      $region55: #{net_forward.1} parent=5 // pred_region
        %s1140 = ssub.s32 %s14, 2
        // Predicated region
        $region57: #{net_forward.1} parent=55 // pred_check
          %p1141 = pneg %p167
        $region58: #{net_forward.1} parent=55 // pred_check_branch
          %1143 = sbr.rel (%p1141) target = $region60
        $region59: #{net_forward.1} parent=55 // pred_region
          %s1144 = sand.u32 %s152, 1
          %s1145 = scalar_lea.sflag [#allocation4], %s1144
          %s1146 = sand.u32 %s152, 1
          %s1147 = scalar_lea.vmem [#allocation3], %s1146
          %1148 = dma.done %s1145, 16
        $region60: #{net_forward.1} parent=55 // pred_fallthru
          _
      $region56: #{net_forward.1} parent=5 // pred_fallthru
        _
    $region6: #{net_forward.1} parent=1 // loop_footer
      %s18 = sadd.s32 1, %s14
    $region7: #{net_forward.1} parent=1 // loop_footer_branch
      %13 = sbr.rel target = $region3
    $region8: #{net_forward.1} parent=1 // loop_exit
      _
    %1149 = vsyncpa [#allocation4], 1
    %s1150 = scalar_lea.sflag [#allocation4], 1
    %1151 = vsyncpa %s1150, 1

</llo_original>
